<compile_context>
chip_gen: v7x
topology: tpu7x:2x2x1
jax: 0.10.0
libtpu: 0.0.40
codegen_flags: <defaults>
</compile_context>

<pallas_src>
import functools

import jax
import jax.numpy as jnp
from jax.experimental import pallas as pl
from jax.experimental.pallas import tpu as pltpu


# ---------------------------------------------------------------------------
# Kernel
# ---------------------------------------------------------------------------
def _grad_loss_kernel(a_ref, sx_ref, sy_ref, *, w, b, steps, acc_rows,
                      needs_mask):
    """Lane-dense gradient-sum kernel.

    a_ref : (tb, H*W)           block of flattened images (native dtype)
    sx_ref: (1, acc_rows, H*W)  resident f32 accumulator for sum |a[k]-a[k+1]|
    sy_ref: (1, acc_rows, H*W)  resident f32 accumulator for sum |a[k]-a[k+W]|

    The wrap terms (last column for dx, last row for dy) are NOT masked here;
    they are cropped in the JAX epilogue.
    """
    i = pl.program_id(1)

    @pl.when(i == 0)
    def _():
        sx_ref[...] = jnp.zeros_like(sx_ref)
        sy_ref[...] = jnp.zeros_like(sy_ref)

    a = a_ref[...]                              # (tb, hw), native dtype
    tb, hw = a.shape

    if needs_mask:
        # cdiv blocking: rows past the end of the batch (ragged last block or
        # clamped duplicate blocks) are zeroed so they contribute |0-0| = 0.
        blk = pl.program_id(0) * steps + i
        row = jax.lax.broadcasted_iota(jnp.int32, (tb, 1), 0) + blk * tb
        a = jnp.where(row < b, a, 0)

    # Neighbour differences via lane rotation on the XLU (no misaligned
    # :-1/1: slices, no VMEM copies).  roll(a, hw - s) brings a[k+s] to k.
    dx = a - pltpu.roll(a, hw - 1, 1)           # a[k] - a[(k + 1) % hw]
    dy = a - pltpu.roll(a, hw - w, 1)           # a[k] - a[(k + w) % hw]
    gx = jnp.abs(dx)
    gy = jnp.abs(dy)

    # Reduce the block rows only down to one sublane tile per step (VPU vreg
    # add-tree); the 8/16 -> 1 cross-sublane collapse is done once in the
    # epilogue, keeping the XLU free for the rolls.
    if acc_rows > 1:
        gx = jnp.sum(gx.reshape(tb // acc_rows, acc_rows, hw), axis=0,
                     dtype=jnp.float32)
        gy = jnp.sum(gy.reshape(tb // acc_rows, acc_rows, hw), axis=0,
                     dtype=jnp.float32)
    else:
        gx = jnp.sum(gx, axis=0, dtype=jnp.float32, keepdims=True)
        gy = jnp.sum(gy, axis=0, dtype=jnp.float32, keepdims=True)

    sx_ref[...] += gx[None]
    sy_ref[...] += gy[None]


# ---------------------------------------------------------------------------
# Reference (also used for degenerate / oversized fallbacks)
# ---------------------------------------------------------------------------
def gradient_loss_ref(a: jax.Array) -> jax.Array:
    gx = jnp.abs(a[:, :, :, :-1] - a[:, :, :, 1:])
    gy = jnp.abs(a[:, :, :-1, :] - a[:, :, 1:, :])
    return jnp.mean(gx) + jnp.mean(gy)


# ---------------------------------------------------------------------------
# Wrapper
# ---------------------------------------------------------------------------
def _vmem_budget_bytes() -> int:
    try:
        cap = int(pltpu.get_tpu_info().vmem_capacity_bytes)
    except Exception:
        cap = 128 * 1024 * 1024
    # ~25% headroom for the compiler, and never more than 48 MiB so the same
    # tiling also leaves room on v7x's 64 MiB per-TensorCore VMEM.
    return int(min(cap * 3 // 4, 48 * 1024 * 1024))


def _num_tensorcores() -> int:
    """Best-effort count of TensorCores sharing HBM on one jax device."""
    try:
        kind = jax.devices()[0].device_kind.lower()
    except Exception:
        return 1
    if "tpu" not in kind:
        return 1
    # Dual-TensorCore chips (megacore v4/v5p, v7x). v5e/v6e are single-core.
    if any(tag in kind for tag in ("v4", "v5p", "v7", "7x")):
        return 2
    return 1


def gradient_loss(a: jax.Array,
                  *,
                  max_block_bytes: int = 8 * 1024 * 1024,
                  vmem_limit_bytes: int | None = None) -> jax.Array:
    """L1 loss on the image gradient of an NCHW tensor. Returns a scalar."""
    n, c, h, w = a.shape
    b = n * c

    if b == 0 or h < 2 or w < 2:
        # Degenerate spatial dims: match torch (mean of empty -> nan).
        return gradient_loss_ref(a)

    dtype = jnp.dtype(a.dtype)
    itemsize = dtype.itemsize
    hw = h * w
    sub = max(8, 32 // itemsize)          # sublane tile: 8 f32 / 16 bf16 / 32 i8

    if vmem_limit_bytes is None:
        vmem_limit_bytes = _vmem_budget_bytes()
    vmem_limit_bytes = int(vmem_limit_bytes)

    # Per-image-row footprint: double-buffered input + two rolled copies +
    # |dx| / |dy| temporaries (all native dtype); fixed term: f32 accumulators
    # (x2 buffers) + slack.
    per_row = hw * itemsize * 6
    fixed = 2 * 2 * sub * hw * 4 + (2 << 20)
    if per_row * min(b, sub) + fixed > vmem_limit_bytes:
        # TODO(synk): spatially tiled variant with a 1-row halo for dy for
        # very large single images; fall back to plain JAX for now.
        return gradient_loss_ref(a)

    tb_cap = max(1, (vmem_limit_bytes - fixed) // per_row)
    tb_cap = min(tb_cap, max(1, max_block_bytes // (hw * itemsize)))
    tb_cap = min(tb_cap, b)

    # Engage the 2-way split only on dual-TensorCore chips with enough work;
    # on single-core v5e/v6e keep one stream of the biggest blocks.
    n_split = _num_tensorcores() if b >= 2 * sub else 1

    target = min(tb_cap, pl.cdiv(b, n_split))
    if target >= b:
        tb = b                                  # full batch dim: any size legal
    else:
        tb = max(sub, (target // sub) * sub)    # multiple of the sublane tile
        if tb >= b:
            tb = b

    nblocks = pl.cdiv(b, tb)
    n_split = min(n_split, nblocks)
    steps = pl.cdiv(nblocks, n_split)
    needs_mask = (n_split * steps * tb) != b

    if tb % sub == 0:
        acc_rows = sub
    elif tb % 8 == 0:
        acc_rows = 8
    else:
        acc_rows = 1

    if needs_mask:
        last_blk = nblocks - 1

        def in_index(s, i):
            # Clamp so the DMA never starts past the array; the duplicated /
            # ragged rows are zeroed inside the kernel via the row mask.
            return (jnp.minimum(s * steps + i, last_blk), 0)
    else:
        def in_index(s, i):
            return (s * steps + i, 0)

    kernel = functools.partial(_grad_loss_kernel, w=w, b=b, steps=steps,
                               acc_rows=acc_rows, needs_mask=needs_mask)

    a2 = a.reshape(b, hw)                       # layout-preserving, no HBM copy

    sum_x, sum_y = pl.pallas_call(
        kernel,
        out_shape=(
            jax.ShapeDtypeStruct((n_split, acc_rows, hw), jnp.float32),
            jax.ShapeDtypeStruct((n_split, acc_rows, hw), jnp.float32),
        ),
        grid_spec=pltpu.PrefetchScalarGridSpec(
            num_scalar_prefetch=0,
            grid=(n_split, steps),
            in_specs=[pl.BlockSpec((tb, hw), in_index)],
            out_specs=[
                pl.BlockSpec((1, acc_rows, hw), lambda s, i: (s, 0, 0)),
                pl.BlockSpec((1, acc_rows, hw), lambda s, i: (s, 0, 0)),
            ],
        ),
        compiler_params=pltpu.CompilerParams(
            # "parallel" engages megacore sharding of the split axis on
            # dual-TensorCore chips; it is a no-op on single-core parts.
            dimension_semantics=("parallel", "arbitrary"),
            vmem_limit_bytes=vmem_limit_bytes,
        ),
    )(a2)

    # Epilogue on the tiny accumulators: collapse splits + sublane rows, then
    # crop the wrap column (dx) / wrap row (dy) and normalise like torch.mean.
    sx = jnp.sum(sum_x, axis=(0, 1)).reshape(h, w)
    sy = jnp.sum(sum_y, axis=(0, 1)).reshape(h, w)
    n_x = b * h * (w - 1)
    n_y = b * (h - 1) * w
    loss = jnp.sum(sx[:, : w - 1]) / n_x + jnp.sum(sy[: h - 1, :]) / n_y
    return loss.astype(a.dtype)


# ---------------------------------------------------------------------------
# Self-test
# ---------------------------------------------------------------------------
if __name__ == "__main__":
    key = jax.random.PRNGKey(0)
    ks = jax.random.split(key, 6)

    def _check(name, got, want, tol):
        got = jax.block_until_ready(got)
        want = jax.block_until_ready(want)
        ok = jnp.allclose(jnp.asarray(got, jnp.float32),
                          jnp.asarray(want, jnp.float32),
                          rtol=tol, atol=tol)
        assert bool(ok), f"{name}: kernel={got} ref={want}"

    # 1) primary shape: single full-batch block.
    x1 = jax.random.normal(ks[0], (2, 4, 16, 16), dtype=jnp.float32)
    _check("single-block", gradient_loss(x1), gradient_loss_ref(x1), 1e-5)

    # 2) W multiple of 128 (lane-aligned dy roll), same unified kernel.
    x2 = jax.random.normal(ks[1], (2, 4, 16, 128), dtype=jnp.float32)
    _check("w128", gradient_loss(x2), gradient_loss_ref(x2), 1e-5)

    # 3) forced multi-step resident accumulation (tb = 8, 2 steps, exact tiling).
    x3 = jax.random.normal(ks[2], (4, 4, 16, 16), dtype=jnp.float32)
    _check("multi-step",
           gradient_loss(x3, max_block_bytes=8 * 1024),
           gradient_loss_ref(x3), 1e-5)

    # 4) forced multi-step with a ragged tail (b = 10, tb = 8 -> masked rows,
    #    no jnp.pad of the input).
    x4 = jax.random.normal(ks[3], (5, 2, 16, 16), dtype=jnp.float32)
    _check("ragged-tail",
           gradient_loss(x4, max_block_bytes=8 * 1024),
           gradient_loss_ref(x4), 1e-5)

    # 5) bf16 input: differences in bf16, accumulation in f32.
    x5 = jax.random.normal(ks[4], (2, 4, 16, 16), dtype=jnp.bfloat16)
    _check("bf16", gradient_loss(x5), gradient_loss_ref(x5), 5e-2)

    # 6) batch not a multiple of the sublane tile (b = 3 -> 1-row accumulator).
    x6 = jax.random.normal(ks[5], (1, 3, 16, 16), dtype=jnp.float32)
    _check("b3", gradient_loss(x6), gradient_loss_ref(x6), 1e-5)

    print("KERNEL_OK")
</pallas_src>

<mosaic_0001>
module attributes {stable_mosaic.version = 11 : i64} {
  func.func @_grad_loss_kernel(%arg0: i32, %arg1: i32, %arg2: memref<8x256xf32, #tpu.memory_space<vmem>>, %arg3: memref<1x8x256xf32, #tpu.memory_space<vmem>>, %arg4: memref<1x8x256xf32, #tpu.memory_space<vmem>>) attributes {dimension_semantics = [#tpu.dimension_semantics<parallel>, #tpu.dimension_semantics<arbitrary>], iteration_bounds = array<i64: 1, 1>, scalar_prefetch = 0 : i64, scratch_operands = 0 : i64, tpu.core_type = #tpu.core_type<tc>, window_params = [{transform_indices = @transform_0, window_bounds = array<i64: 8, 256>}, {transform_indices = @transform_1, window_bounds = array<i64: 1, 8, 256>}, {transform_indices = @transform_2, window_bounds = array<i64: 1, 8, 256>}]} {
    %c0_i32 = arith.constant 0 : i32
    %0 = arith.cmpi eq, %arg1, %c0_i32 : i32
    %1 = arith.extui %0 : i1 to i32
    %c0_i32_0 = arith.constant 0 : i32
    %2 = arith.cmpi ne, %1, %c0_i32_0 : i32
    scf.if %2 {
      %cst_15 = arith.constant 0.000000e+00 : f32
      %22 = vector.broadcast %cst_15 : f32 to vector<1x8x256xf32>
      %c0_16 = arith.constant 0 : index
      %c0_17 = arith.constant 0 : index
      %c0_18 = arith.constant 0 : index
      %23 = vector.load %arg3[%c0_16, %c0_17, %c0_18] : memref<1x8x256xf32, #tpu.memory_space<vmem>>, vector<1x8x256xf32>
      tpu.vector_store %arg3[%c0_16, %c0_17, %c0_18], %22 {strides = array<i32>} : memref<1x8x256xf32, #tpu.memory_space<vmem>>, vector<1x8x256xf32>,
      %cst_19 = arith.constant 0.000000e+00 : f32
      %24 = vector.broadcast %cst_19 : f32 to vector<1x8x256xf32>
      %c0_20 = arith.constant 0 : index
      %c0_21 = arith.constant 0 : index
      %c0_22 = arith.constant 0 : index
      %25 = vector.load %arg4[%c0_20, %c0_21, %c0_22] : memref<1x8x256xf32, #tpu.memory_space<vmem>>, vector<1x8x256xf32>
      tpu.vector_store %arg4[%c0_20, %c0_21, %c0_22], %24 {strides = array<i32>} : memref<1x8x256xf32, #tpu.memory_space<vmem>>, vector<1x8x256xf32>,
    } else {
    }
    %c0 = arith.constant 0 : index
    %c0_1 = arith.constant 0 : index
    %3 = vector.load %arg2[%c0, %c0_1] : memref<8x256xf32, #tpu.memory_space<vmem>>, vector<8x256xf32>
    %c255_i32 = arith.constant 255 : i32
    %4 = tpu.dynamic_rotate %3 by %c255_i32 dim 1 : vector<8x256xf32>, i32 -> vector<8x256xf32>
    %5 = arith.subf %3, %4 : vector<8x256xf32>
    %c240_i32 = arith.constant 240 : i32
    %6 = tpu.dynamic_rotate %3 by %c240_i32 dim 1 : vector<8x256xf32>, i32 -> vector<8x256xf32>
    %7 = arith.subf %3, %6 : vector<8x256xf32>
    %8 = math.absf %5 : vector<8x256xf32>
    %9 = math.absf %7 : vector<8x256xf32>
    %10 = vector.shape_cast %8 : vector<8x256xf32> to vector<1x8x256xf32>
    %cst = arith.constant dense<0.000000e+00> : vector<8x256xf32>
    %11 = vector.multi_reduction <add>, %10, %cst [0] : vector<1x8x256xf32> to vector<8x256xf32>
    %12 = vector.shape_cast %9 : vector<8x256xf32> to vector<1x8x256xf32>
    %cst_2 = arith.constant dense<0.000000e+00> : vector<8x256xf32>
    %13 = vector.multi_reduction <add>, %12, %cst_2 [0] : vector<1x8x256xf32> to vector<8x256xf32>
    %c0_3 = arith.constant 0 : index
    %c0_4 = arith.constant 0 : index
    %c0_5 = arith.constant 0 : index
    %14 = vector.load %arg3[%c0_3, %c0_4, %c0_5] : memref<1x8x256xf32, #tpu.memory_space<vmem>>, vector<1x8x256xf32>
    %15 = vector.shape_cast %11 : vector<8x256xf32> to vector<1x8x256xf32>
    %16 = arith.addf %14, %15 : vector<1x8x256xf32>
    %c0_6 = arith.constant 0 : index
    %c0_7 = arith.constant 0 : index
    %c0_8 = arith.constant 0 : index
    %17 = vector.load %arg3[%c0_6, %c0_7, %c0_8] : memref<1x8x256xf32, #tpu.memory_space<vmem>>, vector<1x8x256xf32>
    tpu.vector_store %arg3[%c0_6, %c0_7, %c0_8], %16 {strides = array<i32>} : memref<1x8x256xf32, #tpu.memory_space<vmem>>, vector<1x8x256xf32>,
    %c0_9 = arith.constant 0 : index
    %c0_10 = arith.constant 0 : index
    %c0_11 = arith.constant 0 : index
    %18 = vector.load %arg4[%c0_9, %c0_10, %c0_11] : memref<1x8x256xf32, #tpu.memory_space<vmem>>, vector<1x8x256xf32>
    %19 = vector.shape_cast %13 : vector<8x256xf32> to vector<1x8x256xf32>
    %20 = arith.addf %18, %19 : vector<1x8x256xf32>
    %c0_12 = arith.constant 0 : index
    %c0_13 = arith.constant 0 : index
    %c0_14 = arith.constant 0 : index
    %21 = vector.load %arg4[%c0_12, %c0_13, %c0_14] : memref<1x8x256xf32, #tpu.memory_space<vmem>>, vector<1x8x256xf32>
    tpu.vector_store %arg4[%c0_12, %c0_13, %c0_14], %20 {strides = array<i32>} : memref<1x8x256xf32, #tpu.memory_space<vmem>>, vector<1x8x256xf32>,
    return
  }
  func.func @transform_0(%arg0: i32, %arg1: i32) -> (i32, i32) {
    %c1_i32 = arith.constant 1 : i32
    %0 = arith.muli %arg0, %c1_i32 : i32
    %1 = arith.addi %0, %arg1 : i32
    %c0_i32 = arith.constant 0 : i32
    %c0_i32_0 = arith.constant 0 : i32
    return %1, %c0_i32 : i32, i32
  }
  func.func @transform_1(%arg0: i32, %arg1: i32) -> (i32, i32, i32) {
    %c0_i32 = arith.constant 0 : i32
    %c0_i32_0 = arith.constant 0 : i32
    %c0_i32_1 = arith.constant 0 : i32
    return %arg0, %c0_i32, %c0_i32_0 : i32, i32, i32
  }
  func.func @transform_2(%arg0: i32, %arg1: i32) -> (i32, i32, i32) {
    %c0_i32 = arith.constant 0 : i32
    %c0_i32_0 = arith.constant 0 : i32
    %c0_i32_1 = arith.constant 0 : i32
    return %arg0, %c0_i32, %c0_i32_0 : i32, i32, i32
  }
}

</mosaic_0001>

<llo_original>
// kernel: tpu_custom_call.1
$region0: #{tpu_custom_call.1}
  #allocation0 [shape = 'u32[]', space=smem, size = 0x4, offset = 0x4, fixed_abs, tag = 'smem constant byte address 0x4 - core index']
  #allocation1 [shape = 'u32[144,128]{1,0:T(1,128)}', space=vmem, size = 0x12000, scoped, tag = 'internal scratch']
  %s0 = inlined_call_operand.hbm [shape: f32[8,256], index: 0, kind: input, shape index: {}]
  %s1 = inlined_call_operand.hbm [shape: f32[1,8,256], index: 1, kind: output, shape index: {0}]
  %s2 = inlined_call_operand.hbm [shape: f32[1,8,256], index: 2, kind: output, shape index: {1}]
  %3 = xla_tuple %s1, %s2
  %s4 = sld [smem:[#allocation0]]
  $region30: #{tpu_custom_call.1} parent=0
    _
  %s6 = ssub.s32 1, %s4
  %s7 = scalar_select 0, %s6, %s4
  $region1: #{tpu_custom_call.1} parent=0
    #allocation2 [shape = 'u8[8192]{0}', space=vmem, size = 0x2000, scoped, tag = 'input window, operand 0, single buffered']
    #allocation3 [shape = 's32[1]{0}', space=sflag, size = 0x4, scoped, tag = 'scoped memory for tpu_custom_call.1']
    #allocation4 [shape = 's32[1]{0}', space=sflag, size = 0x4, scoped, tag = 'scoped memory for tpu_custom_call.1']
    #allocation5 [shape = 'u8[8192]{0}', space=vmem, size = 0x2000, scoped, tag = 'output window, operand 0, single buffered']
    #allocation6 [shape = 'u8[8192]{0}', space=vmem, size = 0x2000, scoped, tag = 'output window, operand 1, single buffered']
    #allocation7 [shape = 's32[1]{0}', space=sflag, size = 0x4, scoped, tag = 'scoped memory for tpu_custom_call.1']
    %8 = vsyncpa [#allocation3], 0
    %9 = vsyncpa [#allocation4], 0
    %10 = vsyncpa [#allocation7], 0
    // Predicated region
    $region2: #{tpu_custom_call.1} parent=1 // pred_check
      _
    $region3: #{tpu_custom_call.1} parent=1 // pred_check_branch
      %12 = sbr.rel (0) target = $region5
    $region4: #{tpu_custom_call.1} parent=1 // pred_region
      %s13 = sadd.s32 0, 0
      %s15 = ssub.s32 256, 256
      %16 = vsyncadd [#allocation3], %s15
      %s17 = smul.addr %s13, 2
      %s18 = smul.addr %s17, 128
      %s19 = scalar_lea.hbm %s0, %s18
      %s21 = sshll.u32 [#allocation2], 4
      %s22 = int_to_ptr.vmem [resolvable:$true] %s21
      %24 = dma.hbm_to_vmem [thread:$0]  %s19, 256, %s22, [#allocation3]
    $region5: #{tpu_custom_call.1} parent=1 // pred_fallthru
      _
    // Predicated region
    $region6: #{tpu_custom_call.1} parent=1 // pred_check
      _
    $region7: #{tpu_custom_call.1} parent=1 // pred_check_branch
      %26 = sbr.rel (0) target = $region9
    $region8: #{tpu_custom_call.1} parent=1 // pred_region
      %27 = dma.done [#allocation3], 256
    $region9: #{tpu_custom_call.1} parent=1 // pred_fallthru
      _
    %s28 = sadd.s32 0, 0
    %p29 = scmp.eq.s32.totalorder 0, 0
    // Predicated region
    $region10: #{tpu_custom_call.1} parent=1 // pred_check
      %p30 = pneg %p29
    $region11: #{tpu_custom_call.1} parent=1 // pred_check_branch
      %32 = sbr.rel (%p30) target = $region13
    $region12: #{tpu_custom_call.1} parent=1 // pred_region
      %33 = vst [vmem:[#allocation5] sm:$0xff] 0.0
      %34 = vst [vmem:[#allocation5 + $0x8] sm:$0xff] 0.0
      %35 = vst [vmem:[#allocation6] sm:$0xff] 0.0
      %36 = vst [vmem:[#allocation6 + $0x8] sm:$0xff] 0.0
    $region13: #{tpu_custom_call.1} parent=1 // pred_fallthru
      _
    %v37 = vld [vmem:[#allocation2] sm:$0xff]
    %v38 = vld [vmem:[#allocation2 + $0x8] sm:$0xff]
    %39 = vrot.lane.b32.xlu0 %v37, 127
    %v40 = vpop.permute.xlu0 %39
    %41 = vrot.lane.b32.xlu0 %v38, 127
    %v42 = vpop.permute.xlu0 %41
    %v43 = vlaneseq
    %v44 = vand.u32 %v43, 127
    %vm45 = vcmp.lt.s32.totalorder %v44, 127
    %v46 = vsel %vm45, %v40, %v42
    %v47 = vsel %vm45, %v42, %v40
    %v48 = vsub.f32 %v37, %v46
    %v49 = vsub.f32 %v38, %v47
    %50 = vrot.lane.b32.xlu0 %v37, 112
    %v51 = vpop.permute.xlu0 %50
    %52 = vrot.lane.b32.xlu0 %v38, 112
    %v53 = vpop.permute.xlu0 %52
    %vm54 = vcmp.lt.s32.totalorder %v44, 112
    %v55 = vsel %vm54, %v51, %v53
    %v56 = vsel %vm54, %v53, %v51
    %v57 = vsub.f32 %v37, %v55
    %v58 = vsub.f32 %v38, %v56
    %v59 = vand.u32 2147483647, %v48
    %v60 = vand.u32 2147483647, %v49
    %v61 = vand.u32 2147483647, %v57
    %v62 = vand.u32 2147483647, %v58
    %v63 = vadd.f32 %v59, 0.0
    %v64 = vadd.f32 %v60, 0.0
    %v65 = vadd.f32 %v61, 0.0
    %v66 = vadd.f32 %v62, 0.0
    %v67 = vld [vmem:[#allocation5] sm:$0xff]
    %v68 = vld [vmem:[#allocation5 + $0x8] sm:$0xff]
    %v69 = vadd.f32 %v67, %v63
    %v70 = vadd.f32 %v68, %v64
    %71 = vst [vmem:[#allocation5] sm:$0xff] %v69
    %72 = vst [vmem:[#allocation5 + $0x8] sm:$0xff] %v70
    %v73 = vld [vmem:[#allocation6] sm:$0xff]
    %v74 = vld [vmem:[#allocation6 + $0x8] sm:$0xff]
    %v75 = vadd.f32 %v73, %v65
    %v76 = vadd.f32 %v74, %v66
    %77 = vst [vmem:[#allocation6] sm:$0xff] %v75
    %78 = vst [vmem:[#allocation6 + $0x8] sm:$0xff] %v76
    // Predicated region
    $region14: #{tpu_custom_call.1} parent=1 // pred_check
      _
    $region15: #{tpu_custom_call.1} parent=1 // pred_check_branch
      %80 = sbr.rel (0) target = $region17
    $region16: #{tpu_custom_call.1} parent=1 // pred_region
      %s82 = ssub.s32 256, 256
      %83 = vsyncadd [#allocation4], %s82
      %s85 = sshll.u32 [#allocation5], 4
      %s86 = int_to_ptr.vmem [resolvable:$true] %s85
      %88 = dma.vmem_to_hbm [thread:$0]  %s86, 256, %s1, [#allocation4]
    $region17: #{tpu_custom_call.1} parent=1 // pred_fallthru
      _
    // Predicated region
    $region18: #{tpu_custom_call.1} parent=1 // pred_check
      _
    $region19: #{tpu_custom_call.1} parent=1 // pred_check_branch
      %90 = sbr.rel (0) target = $region21
    $region20: #{tpu_custom_call.1} parent=1 // pred_region
      %s92 = ssub.s32 256, 256
      %93 = vsyncadd [#allocation7], %s92
      %s95 = sshll.u32 [#allocation6], 4
      %s96 = int_to_ptr.vmem [resolvable:$true] %s95
      %98 = dma.vmem_to_hbm [thread:$0]  %s96, 256, %s2, [#allocation7]
    $region21: #{tpu_custom_call.1} parent=1 // pred_fallthru
      _
    // Predicated region
    $region22: #{tpu_custom_call.1} parent=1 // pred_check
      _
    $region23: #{tpu_custom_call.1} parent=1 // pred_check_branch
      %100 = sbr.rel (0) target = $region25
    $region24: #{tpu_custom_call.1} parent=1 // pred_region
      %101 = dma.done [#allocation4], 256
    $region25: #{tpu_custom_call.1} parent=1 // pred_fallthru
      _
    // Predicated region
    $region26: #{tpu_custom_call.1} parent=1 // pred_check
      _
    $region27: #{tpu_custom_call.1} parent=1 // pred_check_branch
      %103 = sbr.rel (0) target = $region29
    $region28: #{tpu_custom_call.1} parent=1 // pred_region
      %104 = dma.done [#allocation7], 256
    $region29: #{tpu_custom_call.1} parent=1 // pred_fallthru
      _
    %105 = vsyncpa [#allocation3], 1
    %106 = vsyncpa [#allocation4], 1
    %107 = vsyncpa [#allocation7], 1

</llo_original>
